<compile_context>
chip_gen: v6e
topology: v6e:2x2x1
jax: 0.10.0
libtpu: 0.0.40
codegen_flags: <defaults>
</compile_context>

<pallas_src>
import jax
import jax.numpy as jnp
from jax.experimental import pallas as pl
from jax.experimental.pallas import tpu as pltpu


def hgm_kernel(fp_ref, fc_ref, wcat_ref, b_ref, out_ref):
    """One batch tile of HGM.

    fp_ref  : (TB, Cp)        f_parent tile
    fc_ref  : (TB, Cc)        f_child tile
    wcat_ref: (Cp+Cc, Cp)     concat([w_p.T, w_c.T], 0)   (VMEM resident)
    b_ref   : (1, Cp) f32     fused bias b_p + b_c        (VMEM resident)
    out_ref : (TB, Cp+Cc)     concat([gated_parent, f_child], axis=1)
    """
    fp = fp_ref[...]
    fc = fc_ref[...]

    # Single fused MXU matmul in native (M,K)x(K,N) form; f32 accumulation.
    #   [fp, fc] @ W_cat == fp @ w_p.T + fc @ w_c.T
    x_cat = jnp.concatenate([fp, fc], axis=-1)                     # (TB, Cp+Cc)
    logits = jnp.dot(x_cat, wcat_ref[...],
                     preferred_element_type=jnp.float32)           # (TB, Cp) f32

    # Bias (f32) + sigmoid (EUP) + gate (VPU), all in f32.
    gate = jax.nn.sigmoid(logits + b_ref[...])
    gated = (fp.astype(jnp.float32) * gate).astype(out_ref.dtype)

    # Build the full output row in registers -> one dense store per tile.
    out_ref[...] = jnp.concatenate([gated, fc.astype(out_ref.dtype)], axis=-1)


def _round_up(x, m):
    return ((x + m - 1) // m) * m


def hgm_forward(f_parent, f_child, w_p, b_p, w_c, b_c, *, block_b=2048):
    """JAX wrapper reproducing HGM.forward.

    f_parent: (B, Cp), f_child: (B, Cc)   (any float dtype; bf16 halves HBM traffic)
    w_p: (Cp, Cp) PyTorch (out, in) layout; b_p: (Cp,)
    w_c: (Cp, Cc) PyTorch (out, in) layout; b_c: (Cp,)
    Returns (B, Cp + Cc) = concat([f_parent * gate, f_child], axis=1).
    """
    B, Cp = f_parent.shape
    Bc, Cc = f_child.shape
    assert B == Bc

    act_dtype = f_parent.dtype

    # Fold both biases once, in f32 (no extra rounding even for bf16 streams).
    bias = (b_p.astype(jnp.float32) + b_c.astype(jnp.float32)).reshape(1, Cp)

    # One-time wrapper-side transpose + concat of the two weights into the
    # native MXU (K, N) layout. Streamed in the activation dtype.
    w_cat = jnp.concatenate([w_p.T, w_c.T], axis=0).astype(act_dtype)  # (Cp+Cc, Cp)

    # Batch tile: as large as sensible (HBM-bound kernel -> amortize the
    # ~0.35 us/step pipeline overhead), multiple of 16 so bf16 sublane
    # packing is satisfied, and capped at ~B/2 so the grid has >= 2 steps
    # for megacore sharding on v7x. Partial last tile is handled by Pallas
    # block padding / masked stores (rows are independent).
    tb = min(block_b, max(16, _round_up(pl.cdiv(B, 2), 16)))
    grid = (pl.cdiv(B, tb),)

    out = pl.pallas_call(
        hgm_kernel,
        out_shape=jax.ShapeDtypeStruct((B, Cp + Cc), act_dtype),
        grid_spec=pltpu.PrefetchScalarGridSpec(
            num_scalar_prefetch=0,
            grid=grid,
            in_specs=[
                pl.BlockSpec((tb, Cp), lambda i: (i, 0)),        # f_parent tile
                pl.BlockSpec((tb, Cc), lambda i: (i, 0)),        # f_child tile
                pl.BlockSpec((Cp + Cc, Cp), lambda i: (0, 0)),   # W_cat (resident)
                pl.BlockSpec((1, Cp), lambda i: (0, 0)),         # fused bias (resident)
            ],
            out_specs=pl.BlockSpec((tb, Cp + Cc), lambda i: (i, 0)),
        ),
        compiler_params=pltpu.CompilerParams(
            dimension_semantics=("parallel",),
            # Working set is a few MiB even at tb=2048 f32; only raise
            # vmem_limit_bytes if block_b is pushed past ~8K rows in f32.
        ),
    )(f_parent, f_child, w_cat, bias)
    return out


def hgm_reference(f_parent, f_child, w_p, b_p, w_c, b_c):
    gate = jax.nn.sigmoid(f_parent @ w_p.T + b_p + f_child @ w_c.T + b_c)
    return jnp.concatenate([f_parent * gate, f_child], axis=1)


if __name__ == "__main__":
    B, Cp, Cc = 2, 32, 48

    key = jax.random.PRNGKey(0)
    k_fp, k_fc, k_wp, k_bp, k_wc, k_bc = jax.random.split(key, 6)

    f_parent = jax.random.normal(k_fp, (B, Cp), dtype=jnp.float32)
    f_child = jax.random.normal(k_fc, (B, Cc), dtype=jnp.float32)

    # Deterministic parameter init, matching nn.Linear's U(-1/sqrt(in), 1/sqrt(in)).
    bound_p = 1.0 / (Cp ** 0.5)
    bound_c = 1.0 / (Cc ** 0.5)
    w_p = jax.random.uniform(k_wp, (Cp, Cp), jnp.float32, -bound_p, bound_p)
    b_p = jax.random.uniform(k_bp, (Cp,), jnp.float32, -bound_p, bound_p)
    w_c = jax.random.uniform(k_wc, (Cp, Cc), jnp.float32, -bound_c, bound_c)
    b_c = jax.random.uniform(k_bc, (Cp,), jnp.float32, -bound_c, bound_c)

    out = hgm_forward(f_parent, f_child, w_p, b_p, w_c, b_c)
    out = jax.block_until_ready(out)

    ref = hgm_reference(f_parent, f_child, w_p, b_p, w_c, b_c)
    assert out.shape == (B, Cp + Cc)
    assert jnp.allclose(out, ref, atol=1e-5, rtol=1e-5)

    print("KERNEL_OK")
</pallas_src>

<mosaic_0001>
module attributes {stable_mosaic.version = 11 : i64} {
  func.func @hgm_kernel(%arg0: i32, %arg1: memref<16x32xf32, #tpu.memory_space<vmem>>, %arg2: memref<16x48xf32, #tpu.memory_space<vmem>>, %arg3: memref<80x32xf32, #tpu.memory_space<vmem>>, %arg4: memref<1x32xf32, #tpu.memory_space<vmem>>, %arg5: memref<16x80xf32, #tpu.memory_space<vmem>>) attributes {dimension_semantics = [#tpu.dimension_semantics<parallel>], iteration_bounds = array<i64: 1>, scalar_prefetch = 0 : i64, scratch_operands = 0 : i64, tpu.core_type = #tpu.core_type<tc>, window_params = [{transform_indices = @transform_0, window_bounds = array<i64: 16, 32>}, {transform_indices = @transform_1, window_bounds = array<i64: 16, 48>}, {pipeline_mode = #tpu.pipeline_mode<synchronous>, transform_indices = @transform_2, window_bounds = array<i64: 80, 32>}, {pipeline_mode = #tpu.pipeline_mode<synchronous>, transform_indices = @transform_3, window_bounds = array<i64: 1, 32>}, {transform_indices = @transform_4, window_bounds = array<i64: 16, 80>}]} {
    %c0 = arith.constant 0 : index
    %c0_0 = arith.constant 0 : index
    %0 = vector.load %arg1[%c0, %c0_0] : memref<16x32xf32, #tpu.memory_space<vmem>>, vector<16x32xf32>
    %c0_1 = arith.constant 0 : index
    %c0_2 = arith.constant 0 : index
    %1 = vector.load %arg2[%c0_1, %c0_2] : memref<16x48xf32, #tpu.memory_space<vmem>>, vector<16x48xf32>
    %2 = tpu.concatenate %0, %1 in 1 : vector<16x32xf32>, vector<16x48xf32> -> vector<16x80xf32>
    %c0_3 = arith.constant 0 : index
    %c0_4 = arith.constant 0 : index
    %3 = vector.load %arg3[%c0_3, %c0_4] : memref<80x32xf32, #tpu.memory_space<vmem>>, vector<80x32xf32>
    %cst = arith.constant dense<0.000000e+00> : vector<16x32xf32>
    %4 = tpu.matmul %2, %3, %cst {dimension_numbers = #tpu.dot_dimension_numbers<[1], [0], [0], [1], [0, 0, 1, 1], [], []>} : vector<16x80xf32>, vector<80x32xf32>, vector<16x32xf32> -> vector<16x32xf32>
    %c0_5 = arith.constant 0 : index
    %c0_6 = arith.constant 0 : index
    %5 = vector.load %arg4[%c0_5, %c0_6] : memref<1x32xf32, #tpu.memory_space<vmem>>, vector<1x32xf32>
    %6 = vector.broadcast %5 : vector<1x32xf32> to vector<16x32xf32>
    %7 = arith.addf %4, %6 : vector<16x32xf32>
    %8 = arith.negf %7 : vector<16x32xf32>
    %9 = math.exp %8 : vector<16x32xf32>
    %cst_7 = arith.constant 1.000000e+00 : f32
    %10 = vector.broadcast %cst_7 : f32 to vector<16x32xf32>
    %11 = arith.addf %10, %9 : vector<16x32xf32>
    %12 = arith.divf %10, %11 : vector<16x32xf32>
    %13 = arith.mulf %0, %12 : vector<16x32xf32>
    %14 = tpu.concatenate %13, %1 in 1 : vector<16x32xf32>, vector<16x48xf32> -> vector<16x80xf32>
    %c0_8 = arith.constant 0 : index
    %c0_9 = arith.constant 0 : index
    %15 = vector.load %arg5[%c0_8, %c0_9] : memref<16x80xf32, #tpu.memory_space<vmem>>, vector<16x80xf32>
    tpu.vector_store %arg5[%c0_8, %c0_9], %14 {strides = array<i32>} : memref<16x80xf32, #tpu.memory_space<vmem>>, vector<16x80xf32>,
    return
  }
  func.func @transform_0(%arg0: i32) -> (i32, i32) {
    %c0_i32 = arith.constant 0 : i32
    %c0_i32_0 = arith.constant 0 : i32
    return %arg0, %c0_i32 : i32, i32
  }
  func.func @transform_1(%arg0: i32) -> (i32, i32) {
    %c0_i32 = arith.constant 0 : i32
    %c0_i32_0 = arith.constant 0 : i32
    return %arg0, %c0_i32 : i32, i32
  }
  func.func @transform_2(%arg0: i32) -> (i32, i32) {
    %c0_i32 = arith.constant 0 : i32
    %c0_i32_0 = arith.constant 0 : i32
    %c0_i32_1 = arith.constant 0 : i32
    return %c0_i32, %c0_i32_0 : i32, i32
  }
  func.func @transform_3(%arg0: i32) -> (i32, i32) {
    %c0_i32 = arith.constant 0 : i32
    %c0_i32_0 = arith.constant 0 : i32
    %c0_i32_1 = arith.constant 0 : i32
    return %c0_i32, %c0_i32_0 : i32, i32
  }
  func.func @transform_4(%arg0: i32) -> (i32, i32) {
    %c0_i32 = arith.constant 0 : i32
    %c0_i32_0 = arith.constant 0 : i32
    return %arg0, %c0_i32 : i32, i32
  }
}

</mosaic_0001>

<llo_original>
// kernel: tpu_custom_call.1
$region0: #{tpu_custom_call.1}
  #allocation0 [shape = 'u32[]', space=smem, size = 0x4, offset = 0x4, fixed_abs, tag = 'smem constant byte address 0x4 - core index']
  #allocation1 [shape = 'u32[144,128]{1,0:T(1,128)}', space=vmem, size = 0x12000, scoped, tag = 'internal scratch']
  %s0 = inlined_call_operand.vmem [shape: f32[2,32], index: 0, kind: input, shape index: {}]
  %s1 = inlined_call_operand.vmem [shape: f32[2,48], index: 1, kind: input, shape index: {}]
  %s2 = inlined_call_operand.vmem [shape: f32[80,32], index: 2, kind: input, shape index: {}]
  %s3 = inlined_call_operand.vmem [shape: f32[1,32], index: 3, kind: input, shape index: {}]
  %s4 = inlined_call_operand.hbm [shape: f32[2,80], index: 4, kind: output, shape index: {}]
  %s5 = sld [smem:[#allocation0]]
  $region26: #{tpu_custom_call.1} parent=0
    _
  %s7 = ssub.s32 1, %s5
  %s8 = scalar_select 0, %s7, %s5
  $region1: #{tpu_custom_call.1} parent=0
    #allocation2 [shape = 'u8[8192]{0}', space=vmem, size = 0x2000, scoped, tag = 'output window, operand 0, single buffered']
    #allocation3 [shape = 's32[1]{0}', space=sflag, size = 0x4, scoped, tag = 'scoped memory for tpu_custom_call.1']
    %9 = vsyncpa [#allocation3], 0
    // Predicated region
    $region2: #{tpu_custom_call.1} parent=1 // pred_check
      _
    $region3: #{tpu_custom_call.1} parent=1 // pred_check_branch
      %11 = sbr.rel (0) target = $region5
    $region4: #{tpu_custom_call.1} parent=1 // pred_region
      _
    $region5: #{tpu_custom_call.1} parent=1 // pred_fallthru
      _
    // Predicated region
    $region6: #{tpu_custom_call.1} parent=1 // pred_check
      _
    $region7: #{tpu_custom_call.1} parent=1 // pred_check_branch
      %13 = sbr.rel (0) target = $region9
    $region8: #{tpu_custom_call.1} parent=1 // pred_region
      _
    $region9: #{tpu_custom_call.1} parent=1 // pred_fallthru
      _
    // Predicated region
    $region10: #{tpu_custom_call.1} parent=1 // pred_check
      _
    $region11: #{tpu_custom_call.1} parent=1 // pred_check_branch
      %15 = sbr.rel (0) target = $region13
    $region12: #{tpu_custom_call.1} parent=1 // pred_region
      _
    $region13: #{tpu_custom_call.1} parent=1 // pred_fallthru
      _
    // Predicated region
    $region14: #{tpu_custom_call.1} parent=1 // pred_check
      _
    $region15: #{tpu_custom_call.1} parent=1 // pred_check_branch
      %17 = sbr.rel (0) target = $region17
    $region16: #{tpu_custom_call.1} parent=1 // pred_region
      _
    $region17: #{tpu_custom_call.1} parent=1 // pred_fallthru
      _
    %v18 = vld [vmem:[%s0] sm:$0xff]
    %v19 = vld [vmem:[%s0 + $0x8] sm:$0xff]
    %v20 = vld [vmem:[%s1] sm:$0xff]
    %v21 = vld [vmem:[%s1 + $0x8] sm:$0xff]
    %24 = vrot.lane.b32.xlu0 %v20, 32
    %v25 = vpop.permute.xlu0 %24
    %26 = vrot.lane.b32.xlu0 %v21, 32
    %v27 = vpop.permute.xlu0 %26
    %vm30 = vcmask 261120
    %v31 = vsel %vm30, %v18, %v25
    %v32 = vsel %vm30, %v19, %v27
    %v33 = vld [vmem:[%s2] sm:$0xff]
    %v34 = vld [vmem:[%s2 + $0x8] sm:$0xff]
    %v35 = vld [vmem:[%s2 + $0x10] sm:$0xff]
    %v36 = vld [vmem:[%s2 + $0x18] sm:$0xff]
    %v37 = vld [vmem:[%s2 + $0x20] sm:$0xff]
    %v38 = vld [vmem:[%s2 + $0x28] sm:$0xff]
    %v39 = vld [vmem:[%s2 + $0x30] sm:$0xff]
    %v40 = vld [vmem:[%s2 + $0x38] sm:$0xff]
    %v41 = vld [vmem:[%s2 + $0x40] sm:$0xff]
    %v42 = vld [vmem:[%s2 + $0x48] sm:$0xff]
    %v43 = vld [vmem:[%s3] sm:$0x1]
    %v45 = vlaneseq
    %v46 = vshrl.u32 %v45, 7
    %v47 = vsub.s32 0, %v46
    %v48 = vrot.slane %v43, %v47
    %vm50 = vcmask 654336
    %v52 = vsel %vm50, %v31, 0
    %v55 = vsel %vm50, %v32, 0
    %57 = vmatprep.subr.mxu0 0.0
    %58 = vmatpush1.msra.mxu0 0.0
    %59 = vmatprep.subr.mxu0 0.0
    %60 = vmatpush1.msra.mxu0 0.0
    %61 = vmatprep.subr.mxu0 0.0
    %62 = vmatpush1.msra.mxu0 0.0
    %63 = vmatprep.subr.mxu0 0.0
    %64 = vmatpush1.msra.mxu0 0.0
    %65 = vmatprep.subr.mxu0 0.0
    %66 = vmatpush1.msra.mxu0 0.0
    %67 = vmatprep.subr.mxu0 0.0
    %68 = vmatpush1.msra.mxu0 0.0
    %69 = vmatprep.subr.mxu0 0.0
    %70 = vmatpush1.msra.mxu0 %v42
    %71 = vmatprep.subr.mxu0 0.0
    %72 = vmatpush1.msra.mxu0 %v41
    %73 = vmatprep.subr.mxu0 0.0
    %74 = vmatpush1.msra.mxu0 %v40
    %75 = vmatprep.subr.mxu0 0.0
    %76 = vmatpush1.msra.mxu0 %v39
    %77 = vmatprep.subr.mxu0 0.0
    %78 = vmatpush1.msra.mxu0 %v38
    %79 = vmatprep.subr.mxu0 0.0
    %80 = vmatpush1.msra.mxu0 %v37
    %81 = vmatprep.subr.mxu0 0.0
    %82 = vmatpush1.msra.mxu0 %v36
    %83 = vmatprep.subr.mxu0 0.0
    %84 = vmatpush1.msra.mxu0 %v35
    %85 = vmatprep.subr.mxu0 0.0
    %86 = vmatpush1.msra.mxu0 %v34
    %87 = vmatprep.subr.mxu0 0.0
    %88 = vmatpush1.msra.mxu0 %v33
    %89 = vmatprep.subr.mxu0 0.0
    %90 = vmatpush2.msra.mxu0 0.0
    %91 = vmatprep.subr.mxu0 0.0
    %92 = vmatpush2.msra.mxu0 0.0
    %93 = vmatprep.subr.mxu0 0.0
    %94 = vmatpush2.msra.mxu0 0.0
    %95 = vmatprep.subr.mxu0 0.0
    %96 = vmatpush2.msra.mxu0 0.0
    %97 = vmatprep.subr.mxu0 0.0
    %98 = vmatpush2.msra.mxu0 0.0
    %99 = vmatprep.subr.mxu0 0.0
    %100 = vmatpush2.msra.mxu0 0.0
    %101 = vmatprep.subr.mxu0 0.0
    %102 = vmatpush2.msra.mxu0 0.0
    %103 = vmatprep.subr.mxu0 0.0
    %104 = vmatpush2.msra.mxu0 0.0
    %105 = vmatprep.subr.mxu0 0.0
    %106 = vmatpush2.msra.mxu0 0.0
    %107 = vmatprep.subr.mxu0 0.0
    %108 = vmatpush2.msra.mxu0 0.0
    %109 = vmatprep.subr.mxu0 0.0
    %110 = vmatpush2.msra.mxu0 0.0
    %111 = vmatprep.subr.mxu0 0.0
    %112 = vmatpush2.msra.mxu0 0.0
    %113 = vmatprep.subr.mxu0 0.0
    %114 = vmatpush2.msra.mxu0 0.0
    %115 = vmatprep.subr.mxu0 0.0
    %116 = vmatpush2.msra.mxu0 0.0
    %117 = vmatprep.subr.mxu0 0.0
    %118 = vmatpush2.msra.mxu0 0.0
    %119 = vmatprep.subr.mxu0 0.0
    %120 = vmatpush2.msra.mxu0 0.0
    %121 = vmatprep.mubr.f32.mxu0 0.0
    %122 = vmatmul.mubr.f32.gmra.mxu0 %v52
    %v123 = vpop.f32.mrf.mxu0
    %v124 = vadd.f32 %v48, %v123
    %v125 = vpop.f32.mrf.mxu0
    %126 = vmatprep.mubr.f32.mxu0 0.0
    %127 = vmatmul.mubr.f32.gmra.mxu0 %v55
    %v128 = vpop.f32.mrf.mxu0
    %v129 = vadd.f32 %v48, %v128
    %v130 = vpop.f32.mrf.mxu0
    %131 = vdwg.mxu0
    %v132 = vxor.u32 %v124, 2147483648
    %v133 = vxor.u32 %v129, 2147483648
    %v134 = vmul.f32 %v132, 1.442695
    %v135 = vpow.pop %v134
    %v136 = vmul.f32 %v133, 1.442695
    %v137 = vpow.pop %v136
    %v138 = vadd.f32 %v135, 1.0
    %v139 = vadd.f32 %v137, 1.0
    %v140 = vrcp.pop %v138
    %v141 = vmul.f32 1.0, %v140
    %v142 = vrcp.pop %v139
    %v143 = vmul.f32 1.0, %v142
    %v144 = vmul.f32 %v18, %v141
    %v145 = vmul.f32 %v19, %v143
    %v146 = vsel %vm30, %v144, %v25
    %v147 = vsel %vm30, %v145, %v27
    %148 = vst.msk [vmem:[#allocation2] sm:$0xff] %vm50, %v146
    %149 = vst.msk [vmem:[#allocation2 + $0x8] sm:$0xff] %vm50, %v147
    // Predicated region
    $region18: #{tpu_custom_call.1} parent=1 // pred_check
      _
    $region19: #{tpu_custom_call.1} parent=1 // pred_check_branch
      %151 = sbr.rel (0) target = $region21
    $region20: #{tpu_custom_call.1} parent=1 // pred_region
      %s153 = ssub.s32 256, 32
      %154 = vsyncadd [#allocation3], %s153
      %s155 = sshll.u32 [#allocation2], 4
      %s156 = int_to_ptr.vmem [resolvable:$true] %s155
      %161 = dma.vmem_to_hbm [thread:$0]  %s156, 32, %s4, [#allocation3], 32, 32, 2
    $region21: #{tpu_custom_call.1} parent=1 // pred_fallthru
      _
    // Predicated region
    $region22: #{tpu_custom_call.1} parent=1 // pred_check
      _
    $region23: #{tpu_custom_call.1} parent=1 // pred_check_branch
      %163 = sbr.rel (0) target = $region25
    $region24: #{tpu_custom_call.1} parent=1 // pred_region
      %164 = dma.done [#allocation3], 256
    $region25: #{tpu_custom_call.1} parent=1 // pred_fallthru
      _
    %165 = vsyncpa [#allocation3], 1

</llo_original>
